<compile_context>
chip_gen: v5e
topology: v5e:2x2
jax: 0.10.0
libtpu: 0.0.40
codegen_flags: <defaults>
</compile_context>

<pallas_src>
import jax
import jax.numpy as jnp
from jax.experimental import pallas as pl
from jax.experimental.pallas import tpu as pltpu

LANES = 128
SUBLANES = 8


def _round_up(n, m):
    return ((n + m - 1) // m) * m


def fcq_kernel(x_ref, w1_ref, b1_ref, w2_ref, b2_ref, w3_ref, b3_ref, o_ref):
    # Layer 1: Linear + ReLU (MXU matmul, f32 accumulate; VPU bias + max)
    h1 = jnp.dot(x_ref[...], w1_ref[...], preferred_element_type=jnp.float32)
    h1 = jnp.maximum(h1 + b1_ref[...], 0.0)
    # Hidden layer: Linear + ReLU
    h2 = jnp.dot(h1, w2_ref[...], preferred_element_type=jnp.float32)
    h2 = jnp.maximum(h2 + b2_ref[...], 0.0)
    # Output layer: Linear, no activation — stored straight to the (TB, d_out) tile.
    out = jnp.dot(h2, w3_ref[...], preferred_element_type=jnp.float32)
    o_ref[...] = out + b3_ref[...]


def fcq_forward(x, params, *, tb=2048):
    """x: (B, input_dim) float32; params: (w1, b1, w2, b2, w3, b3) with
    weights stored as (in, out) — the transpose of PyTorch's (out, in)."""
    w1, b1, w2, b2, w3, b3 = params
    B, d_in = x.shape
    h1_dim, h2_dim = w1.shape[1], w2.shape[1]
    d_out = w3.shape[1]

    # --- Batch tiling ------------------------------------------------------
    # Small/medium batch: one full-array block (no (8,128) constraint applies,
    # no wrapper-side pad, no output slice).  Large batch: sublane-aligned
    # tiles of `tb` rows, batch padded up to a tile boundary (grid >= 2, so
    # v7x megacore gets both TensorCores engaged).
    if B <= tb:
        TB = B
        B_p = B
    else:
        TB = _round_up(min(tb, B), SUBLANES)
        B_p = _round_up(B, TB)
        if B_p != B:
            x = jnp.pad(x, ((0, B_p - B), (0, 0)))
    grid = (B_p // TB,)

    # --- VMEM budget: size against the lane-padded footprint ----------------
    # Every narrow (<128-lane) f32 stream occupies TB*128*4 B per buffer:
    # double-buffered x, double-buffered out, plus h1/h2 temporaries.
    row_bytes = LANES * 4
    vmem_est = TB * row_bytes * 6 + (2 << 20)  # + headroom for weights/overheads
    vmem_limit = int(min(64 << 20, max(16 << 20, vmem_est)))

    # --- Cost estimate (real, unpadded figures) -----------------------------
    flops = 2 * B_p * (d_in * h1_dim + h1_dim * h2_dim + h2_dim * d_out)
    bytes_accessed = 4 * (B_p * d_in + B_p * d_out
                          + w1.size + b1.size + w2.size + b2.size
                          + w3.size + b3.size)

    out = pl.pallas_call(
        fcq_kernel,
        out_shape=jax.ShapeDtypeStruct((B_p, d_out), jnp.float32),
        grid=grid,
        in_specs=[
            # x: one batch tile per grid step (auto double-buffered DMA)
            pl.BlockSpec((TB, d_in), lambda i: (i, 0)),
            # weights/biases: constant index_map -> stay resident in VMEM
            pl.BlockSpec(w1.shape, lambda i: (0, 0)),
            pl.BlockSpec(b1.shape, lambda i: (0, 0)),
            pl.BlockSpec(w2.shape, lambda i: (0, 0)),
            pl.BlockSpec(b2.shape, lambda i: (0, 0)),
            pl.BlockSpec(w3.shape, lambda i: (0, 0)),
            pl.BlockSpec(b3.shape, lambda i: (0, 0)),
        ],
        # Output stays at its native (small) lane width: a masked vst on a
        # d_out-lane tile is far cheaper than a 32x-inflated HBM write stream.
        out_specs=pl.BlockSpec((TB, d_out), lambda i: (i, 0)),
        compiler_params=pltpu.CompilerParams(
            dimension_semantics=("parallel",),
            vmem_limit_bytes=vmem_limit),
        cost_estimate=pl.CostEstimate(
            flops=flops, transcendentals=0, bytes_accessed=bytes_accessed),
    )(x, w1, b1, w2, b2, w3, b3)

    # Strip batch padding only if we actually padded (large ragged batches).
    if B_p != B:
        out = out[:B]
    return out


def init_params(key, input_dim, output_dim, hidden_dims=(32, 32)):
    """Deterministic init mimicking nn.Linear's uniform(-1/sqrt(fan_in), 1/sqrt(fan_in)).
    Weights are stored as (in, out)."""
    dims = [input_dim, hidden_dims[0], hidden_dims[1], output_dim]
    params = []
    for i in range(3):
        fan_in, fan_out = dims[i], dims[i + 1]
        key, kw, kb = jax.random.split(key, 3)
        bound = 1.0 / (fan_in ** 0.5)
        w = jax.random.uniform(kw, (fan_in, fan_out), jnp.float32, -bound, bound)
        b = jax.random.uniform(kb, (1, fan_out), jnp.float32, -bound, bound)
        params.extend([w, b])
    return tuple(params)


def _reference(x, params):
    w1, b1, w2, b2, w3, b3 = params
    h = jnp.maximum(x @ w1 + b1, 0.0)
    h = jnp.maximum(h @ w2 + b2, 0.0)
    return h @ w3 + b3


if __name__ == "__main__":
    key = jax.random.PRNGKey(0)
    input_dim = 16     # state dimension
    output_dim = 4     # number of actions
    hidden_dims = (32, 32)

    key, kx, kp, kx2 = jax.random.split(key, 4)
    params = init_params(kp, input_dim, output_dim, hidden_dims)

    # Small single-env style batch: single full-array block, no padding at all.
    x_small = jax.random.normal(kx, (2, input_dim), dtype=jnp.float32)
    out_small = fcq_forward(x_small, params)
    jax.block_until_ready(out_small)
    assert out_small.shape == (2, output_dim)
    assert jnp.allclose(out_small, _reference(x_small, params), atol=1e-5, rtol=1e-5)

    # Larger ragged batch to exercise the batch grid + padding path (grid of 3).
    x_big = jax.random.normal(kx2, (1500, input_dim), dtype=jnp.float32)
    out_big = fcq_forward(x_big, params, tb=512)
    jax.block_until_ready(out_big)
    assert out_big.shape == (1500, output_dim)
    assert jnp.allclose(out_big, _reference(x_big, params), atol=1e-4, rtol=1e-4)

    print("KERNEL_OK")
</pallas_src>

<mosaic_0001>
module attributes {stable_mosaic.version = 11 : i64} {
  func.func @fcq_kernel(%arg0: i32, %arg1: memref<2x16xf32, #tpu.memory_space<vmem>>, %arg2: memref<16x32xf32, #tpu.memory_space<vmem>>, %arg3: memref<1x32xf32, #tpu.memory_space<vmem>>, %arg4: memref<32x32xf32, #tpu.memory_space<vmem>>, %arg5: memref<1x32xf32, #tpu.memory_space<vmem>>, %arg6: memref<32x4xf32, #tpu.memory_space<vmem>>, %arg7: memref<1x4xf32, #tpu.memory_space<vmem>>, %arg8: memref<2x4xf32, #tpu.memory_space<vmem>>) attributes {dimension_semantics = [#tpu.dimension_semantics<parallel>], iteration_bounds = array<i64: 1>, scalar_prefetch = 0 : i64, scratch_operands = 0 : i64, tpu.core_type = #tpu.core_type<tc>, window_params = [{transform_indices = @transform_0, window_bounds = array<i64: 2, 16>}, {pipeline_mode = #tpu.pipeline_mode<synchronous>, transform_indices = @transform_1, window_bounds = array<i64: 16, 32>}, {pipeline_mode = #tpu.pipeline_mode<synchronous>, transform_indices = @transform_2, window_bounds = array<i64: 1, 32>}, {pipeline_mode = #tpu.pipeline_mode<synchronous>, transform_indices = @transform_3, window_bounds = array<i64: 32, 32>}, {pipeline_mode = #tpu.pipeline_mode<synchronous>, transform_indices = @transform_4, window_bounds = array<i64: 1, 32>}, {pipeline_mode = #tpu.pipeline_mode<synchronous>, transform_indices = @transform_5, window_bounds = array<i64: 32, 4>}, {pipeline_mode = #tpu.pipeline_mode<synchronous>, transform_indices = @transform_6, window_bounds = array<i64: 1, 4>}, {transform_indices = @transform_7, window_bounds = array<i64: 2, 4>}]} {
    %c0 = arith.constant 0 : index
    %c0_0 = arith.constant 0 : index
    %0 = vector.load %arg1[%c0, %c0_0] : memref<2x16xf32, #tpu.memory_space<vmem>>, vector<2x16xf32>
    %c0_1 = arith.constant 0 : index
    %c0_2 = arith.constant 0 : index
    %1 = vector.load %arg2[%c0_1, %c0_2] : memref<16x32xf32, #tpu.memory_space<vmem>>, vector<16x32xf32>
    %cst = arith.constant dense<0.000000e+00> : vector<2x32xf32>
    %2 = tpu.matmul %0, %1, %cst {dimension_numbers = #tpu.dot_dimension_numbers<[1], [0], [0], [1], [0, 0, 1, 1], [], []>} : vector<2x16xf32>, vector<16x32xf32>, vector<2x32xf32> -> vector<2x32xf32>
    %c0_3 = arith.constant 0 : index
    %c0_4 = arith.constant 0 : index
    %3 = vector.load %arg3[%c0_3, %c0_4] : memref<1x32xf32, #tpu.memory_space<vmem>>, vector<1x32xf32>
    %4 = vector.broadcast %3 : vector<1x32xf32> to vector<2x32xf32>
    %5 = arith.addf %2, %4 : vector<2x32xf32>
    %cst_5 = arith.constant 0.000000e+00 : f32
    %6 = vector.broadcast %cst_5 : f32 to vector<2x32xf32>
    %7 = arith.maximumf %5, %6 : vector<2x32xf32>
    %c0_6 = arith.constant 0 : index
    %c0_7 = arith.constant 0 : index
    %8 = vector.load %arg4[%c0_6, %c0_7] : memref<32x32xf32, #tpu.memory_space<vmem>>, vector<32x32xf32>
    %cst_8 = arith.constant dense<0.000000e+00> : vector<2x32xf32>
    %9 = tpu.matmul %7, %8, %cst_8 {dimension_numbers = #tpu.dot_dimension_numbers<[1], [0], [0], [1], [0, 0, 1, 1], [], []>} : vector<2x32xf32>, vector<32x32xf32>, vector<2x32xf32> -> vector<2x32xf32>
    %c0_9 = arith.constant 0 : index
    %c0_10 = arith.constant 0 : index
    %10 = vector.load %arg5[%c0_9, %c0_10] : memref<1x32xf32, #tpu.memory_space<vmem>>, vector<1x32xf32>
    %11 = vector.broadcast %10 : vector<1x32xf32> to vector<2x32xf32>
    %12 = arith.addf %9, %11 : vector<2x32xf32>
    %cst_11 = arith.constant 0.000000e+00 : f32
    %13 = vector.broadcast %cst_11 : f32 to vector<2x32xf32>
    %14 = arith.maximumf %12, %13 : vector<2x32xf32>
    %c0_12 = arith.constant 0 : index
    %c0_13 = arith.constant 0 : index
    %15 = vector.load %arg6[%c0_12, %c0_13] : memref<32x4xf32, #tpu.memory_space<vmem>>, vector<32x4xf32>
    %cst_14 = arith.constant dense<0.000000e+00> : vector<2x4xf32>
    %16 = tpu.matmul %14, %15, %cst_14 {dimension_numbers = #tpu.dot_dimension_numbers<[1], [0], [0], [1], [0, 0, 1, 1], [], []>} : vector<2x32xf32>, vector<32x4xf32>, vector<2x4xf32> -> vector<2x4xf32>
    %c0_15 = arith.constant 0 : index
    %c0_16 = arith.constant 0 : index
    %17 = vector.load %arg7[%c0_15, %c0_16] : memref<1x4xf32, #tpu.memory_space<vmem>>, vector<1x4xf32>
    %18 = vector.broadcast %17 : vector<1x4xf32> to vector<2x4xf32>
    %19 = arith.addf %16, %18 : vector<2x4xf32>
    %c0_17 = arith.constant 0 : index
    %c0_18 = arith.constant 0 : index
    %20 = vector.load %arg8[%c0_17, %c0_18] : memref<2x4xf32, #tpu.memory_space<vmem>>, vector<2x4xf32>
    tpu.vector_store %arg8[%c0_17, %c0_18], %19 {strides = array<i32>} : memref<2x4xf32, #tpu.memory_space<vmem>>, vector<2x4xf32>,
    return
  }
  func.func @transform_0(%arg0: i32) -> (i32, i32) {
    %c0_i32 = arith.constant 0 : i32
    %c0_i32_0 = arith.constant 0 : i32
    return %arg0, %c0_i32 : i32, i32
  }
  func.func @transform_1(%arg0: i32) -> (i32, i32) {
    %c0_i32 = arith.constant 0 : i32
    %c0_i32_0 = arith.constant 0 : i32
    %c0_i32_1 = arith.constant 0 : i32
    return %c0_i32, %c0_i32_0 : i32, i32
  }
  func.func @transform_2(%arg0: i32) -> (i32, i32) {
    %c0_i32 = arith.constant 0 : i32
    %c0_i32_0 = arith.constant 0 : i32
    %c0_i32_1 = arith.constant 0 : i32
    return %c0_i32, %c0_i32_0 : i32, i32
  }
  func.func @transform_3(%arg0: i32) -> (i32, i32) {
    %c0_i32 = arith.constant 0 : i32
    %c0_i32_0 = arith.constant 0 : i32
    %c0_i32_1 = arith.constant 0 : i32
    return %c0_i32, %c0_i32_0 : i32, i32
  }
  func.func @transform_4(%arg0: i32) -> (i32, i32) {
    %c0_i32 = arith.constant 0 : i32
    %c0_i32_0 = arith.constant 0 : i32
    %c0_i32_1 = arith.constant 0 : i32
    return %c0_i32, %c0_i32_0 : i32, i32
  }
  func.func @transform_5(%arg0: i32) -> (i32, i32) {
    %c0_i32 = arith.constant 0 : i32
    %c0_i32_0 = arith.constant 0 : i32
    %c0_i32_1 = arith.constant 0 : i32
    return %c0_i32, %c0_i32_0 : i32, i32
  }
  func.func @transform_6(%arg0: i32) -> (i32, i32) {
    %c0_i32 = arith.constant 0 : i32
    %c0_i32_0 = arith.constant 0 : i32
    %c0_i32_1 = arith.constant 0 : i32
    return %c0_i32, %c0_i32_0 : i32, i32
  }
  func.func @transform_7(%arg0: i32) -> (i32, i32) {
    %c0_i32 = arith.constant 0 : i32
    %c0_i32_0 = arith.constant 0 : i32
    return %arg0, %c0_i32 : i32, i32
  }
}

</mosaic_0001>

<llo_original>
// kernel: tpu_custom_call.1
$region0: #{tpu_custom_call.1}
  #allocation0 [shape = 'u32[]', space=smem, size = 0x4, offset = 0x4, fixed_abs, tag = 'smem constant byte address 0x4 - core index']
  #allocation1 [shape = 'u32[72,128]{1,0:T(1,128)}', space=vmem, size = 0x9000, scoped, tag = 'internal scratch']
  %s0 = inlined_call_operand.vmem [shape: f32[2,16], index: 0, kind: input, shape index: {}]
  %s1 = inlined_call_operand.hbm [shape: f32[16,32], index: 1, kind: input, shape index: {}]
  %s2 = inlined_call_operand.vmem [shape: f32[1,32], index: 2, kind: input, shape index: {}]
  %s3 = inlined_call_operand.vmem [shape: f32[32,32], index: 3, kind: input, shape index: {}]
  %s4 = inlined_call_operand.vmem [shape: f32[1,32], index: 4, kind: input, shape index: {}]
  %s5 = inlined_call_operand.vmem [shape: f32[32,4], index: 5, kind: input, shape index: {}]
  %s6 = inlined_call_operand.vmem [shape: f32[1,4], index: 6, kind: input, shape index: {}]
  %s7 = inlined_call_operand.hbm [shape: f32[2,4], index: 7, kind: output, shape index: {}]
  %s8 = sld [smem:[#allocation0]]
  $region42: #{tpu_custom_call.1} parent=0
    _
  %s10 = ssub.s32 1, %s8
  %s11 = scalar_select 0, %s10, %s8
  $region1: #{tpu_custom_call.1} parent=0
    #allocation2 [shape = 'u8[8192]{0}', space=vmem, size = 0x2000, scoped, tag = 'input window, operand 1, single buffered']
    #allocation3 [shape = 's32[1]{0}', space=sflag, size = 0x4, scoped, tag = 'scoped memory for tpu_custom_call.1']
    #allocation4 [shape = 's32[1]{0}', space=sflag, size = 0x4, scoped, tag = 'scoped memory for tpu_custom_call.1']
    #allocation5 [shape = 'u8[1024]{0}', space=vmem, size = 0x400, scoped, tag = 'output window, operand 0, single buffered']
    %12 = vsyncpa [#allocation3], 0
    %13 = vsyncpa [#allocation4], 0
    // Predicated region
    $region2: #{tpu_custom_call.1} parent=1 // pred_check
      _
    $region3: #{tpu_custom_call.1} parent=1 // pred_check_branch
      %15 = sbr.rel (0) target = $region5
    $region4: #{tpu_custom_call.1} parent=1 // pred_region
      _
    $region5: #{tpu_custom_call.1} parent=1 // pred_fallthru
      _
    // Predicated region
    $region6: #{tpu_custom_call.1} parent=1 // pred_check
      _
    $region7: #{tpu_custom_call.1} parent=1 // pred_check_branch
      %17 = sbr.rel (0) target = $region9
    $region8: #{tpu_custom_call.1} parent=1 // pred_region
      %19 = vsyncadd [#allocation3], 0
      %s20 = sshll.u32 %s1, 4
      %s21 = int_to_ptr.hbm [resolvable:$true] %s20
      %s22 = sshll.u32 [#allocation2], 4
      %s23 = int_to_ptr.vmem [resolvable:$true] %s22
      %28 = dma.hbm_to_vmem [thread:$0]  %s21, 256, %s23, [#allocation3], 128, 128, 8
    $region9: #{tpu_custom_call.1} parent=1 // pred_fallthru
      _
    // Predicated region
    $region10: #{tpu_custom_call.1} parent=1 // pred_check
      _
    $region11: #{tpu_custom_call.1} parent=1 // pred_check_branch
      %30 = sbr.rel (0) target = $region13
    $region12: #{tpu_custom_call.1} parent=1 // pred_region
      _
    $region13: #{tpu_custom_call.1} parent=1 // pred_fallthru
      _
    // Predicated region
    $region14: #{tpu_custom_call.1} parent=1 // pred_check
      _
    $region15: #{tpu_custom_call.1} parent=1 // pred_check_branch
      %32 = sbr.rel (0) target = $region17
    $region16: #{tpu_custom_call.1} parent=1 // pred_region
      _
    $region17: #{tpu_custom_call.1} parent=1 // pred_fallthru
      _
    // Predicated region
    $region18: #{tpu_custom_call.1} parent=1 // pred_check
      _
    $region19: #{tpu_custom_call.1} parent=1 // pred_check_branch
      %34 = sbr.rel (0) target = $region21
    $region20: #{tpu_custom_call.1} parent=1 // pred_region
      _
    $region21: #{tpu_custom_call.1} parent=1 // pred_fallthru
      _
    // Predicated region
    $region22: #{tpu_custom_call.1} parent=1 // pred_check
      _
    $region23: #{tpu_custom_call.1} parent=1 // pred_check_branch
      %36 = sbr.rel (0) target = $region25
    $region24: #{tpu_custom_call.1} parent=1 // pred_region
      _
    $region25: #{tpu_custom_call.1} parent=1 // pred_fallthru
      _
    // Predicated region
    $region26: #{tpu_custom_call.1} parent=1 // pred_check
      _
    $region27: #{tpu_custom_call.1} parent=1 // pred_check_branch
      %38 = sbr.rel (0) target = $region29
    $region28: #{tpu_custom_call.1} parent=1 // pred_region
      _
    $region29: #{tpu_custom_call.1} parent=1 // pred_fallthru
      _
    // Predicated region
    $region30: #{tpu_custom_call.1} parent=1 // pred_check
      _
    $region31: #{tpu_custom_call.1} parent=1 // pred_check_branch
      %40 = sbr.rel (0) target = $region33
    $region32: #{tpu_custom_call.1} parent=1 // pred_region
      %42 = dma.done [#allocation3], 256
    $region33: #{tpu_custom_call.1} parent=1 // pred_fallthru
      _
    %v43 = vld [vmem:[%s0] sm:$0x3]
    %v44 = vld [vmem:[#allocation2] sm:$0xff]
    %v45 = vld [vmem:[#allocation2 + $0x8] sm:$0xff]
    %v46 = vld [vmem:[%s2] sm:$0x1]
    %v48 = vperm.slane %v46, 0
    %vm50 = vcmask 130048
    %v52 = vsel %vm50, %v43, 0
    %54 = vmatpush.msra.mxu0 0.0
    %55 = vmatpush.msra.mxu0 0.0
    %56 = vmatpush.msra.mxu0 0.0
    %57 = vmatpush.msra.mxu0 0.0
    %58 = vmatpush.msra.mxu0 0.0
    %59 = vmatpush.msra.mxu0 0.0
    %60 = vmatpush.msra.mxu0 0.0
    %61 = vmatpush.msra.mxu0 0.0
    %62 = vmatpush.msra.mxu0 0.0
    %63 = vmatpush.msra.mxu0 0.0
    %64 = vmatpush.msra.mxu0 0.0
    %65 = vmatpush.msra.mxu0 0.0
    %66 = vmatpush.msra.mxu0 0.0
    %67 = vmatpush.msra.mxu0 0.0
    %68 = vmatpush.msra.mxu0 %v45
    %69 = vmatpush.msra.mxu0 %v44
    %70 = vmatmul.f32.gmra.mxu0 %v52
    %v71 = vpop.f32.mrf.mxu0
    %v72 = vadd.f32 %v48, %v71
    %73 = vdwg.mxu0
    %v74 = vmax.f32 %v72, 0.0
    %v75 = vld [vmem:[%s3] sm:$0xff]
    %v76 = vld [vmem:[%s3 + $0x8] sm:$0xff]
    %v77 = vld [vmem:[%s3 + $0x10] sm:$0xff]
    %v78 = vld [vmem:[%s3 + $0x18] sm:$0xff]
    %v79 = vld [vmem:[%s4] sm:$0x1]
    %v81 = vperm.slane %v79, 0
    %vm83 = vcmask 261120
    %v85 = vsel %vm83, %v74, 0
    %87 = vmatpush.msra.mxu0 0.0
    %88 = vmatpush.msra.mxu0 0.0
    %89 = vmatpush.msra.mxu0 0.0
    %90 = vmatpush.msra.mxu0 0.0
    %91 = vmatpush.msra.mxu0 0.0
    %92 = vmatpush.msra.mxu0 0.0
    %93 = vmatpush.msra.mxu0 0.0
    %94 = vmatpush.msra.mxu0 0.0
    %95 = vmatpush.msra.mxu0 0.0
    %96 = vmatpush.msra.mxu0 0.0
    %97 = vmatpush.msra.mxu0 0.0
    %98 = vmatpush.msra.mxu0 0.0
    %99 = vmatpush.msra.mxu0 %v78
    %100 = vmatpush.msra.mxu0 %v77
    %101 = vmatpush.msra.mxu0 %v76
    %102 = vmatpush.msra.mxu0 %v75
    %103 = vmatmul.f32.gmra.mxu0 %v85
    %v104 = vpop.f32.mrf.mxu0
    %v105 = vadd.f32 %v81, %v104
    %106 = vdwg.mxu0
    %v107 = vmax.f32 %v105, 0.0
    %v108 = vld [vmem:[%s5] sm:$0xff]
    %v109 = vld [vmem:[%s5 + $0x8] sm:$0xff]
    %v110 = vld [vmem:[%s5 + $0x10] sm:$0xff]
    %v111 = vld [vmem:[%s5 + $0x18] sm:$0xff]
    %v112 = vld [vmem:[%s6] sm:$0x1]
    %v114 = vperm.slane %v112, 0
    %v117 = vsel %vm83, %v107, 0
    %119 = vmatpush.msra.mxu0 0.0
    %120 = vmatpush.msra.mxu0 0.0
    %121 = vmatpush.msra.mxu0 0.0
    %122 = vmatpush.msra.mxu0 0.0
    %123 = vmatpush.msra.mxu0 0.0
    %124 = vmatpush.msra.mxu0 0.0
    %125 = vmatpush.msra.mxu0 0.0
    %126 = vmatpush.msra.mxu0 0.0
    %127 = vmatpush.msra.mxu0 0.0
    %128 = vmatpush.msra.mxu0 0.0
    %129 = vmatpush.msra.mxu0 0.0
    %130 = vmatpush.msra.mxu0 0.0
    %131 = vmatpush.msra.mxu0 %v111
    %132 = vmatpush.msra.mxu0 %v110
    %133 = vmatpush.msra.mxu0 %v109
    %134 = vmatpush.msra.mxu0 %v108
    %135 = vmatmul.f32.gmra.mxu0 %v117
    %v136 = vpop.f32.mrf.mxu0
    %v137 = vadd.f32 %v114, %v136
    %138 = vdwg.mxu0
    %vm139 = vcmask 25600
    %140 = vst.msk [vmem:[#allocation5] sm:$0x3] %vm139, %v137
    // Predicated region
    $region34: #{tpu_custom_call.1} parent=1 // pred_check
      _
    $region35: #{tpu_custom_call.1} parent=1 // pred_check_branch
      %142 = sbr.rel (0) target = $region37
    $region36: #{tpu_custom_call.1} parent=1 // pred_region
      %144 = vsyncadd [#allocation4], 0
      %s146 = sshll.u32 [#allocation5], 4
      %s147 = int_to_ptr.vmem [resolvable:$true] %s146
      %s148 = sshll.u32 %s7, 4
      %s149 = int_to_ptr.hbm [resolvable:$true] %s148
      %151 = dma.vmem_to_hbm [thread:$0]  %s147, 32, %s149, [#allocation4]
    $region37: #{tpu_custom_call.1} parent=1 // pred_fallthru
      _
    // Predicated region
    $region38: #{tpu_custom_call.1} parent=1 // pred_check
      _
    $region39: #{tpu_custom_call.1} parent=1 // pred_check_branch
      %153 = sbr.rel (0) target = $region41
    $region40: #{tpu_custom_call.1} parent=1 // pred_region
      %155 = dma.done [#allocation4], 32
    $region41: #{tpu_custom_call.1} parent=1 // pred_fallthru
      _
    %156 = vsyncpa [#allocation3], 1
    %157 = vsyncpa [#allocation4], 1

</llo_original>
